<compile_context>
chip_gen: v7x
topology: tpu7x:2x2x1
jax: 0.10.0
libtpu: 0.0.40
codegen_flags: <defaults>
</compile_context>

<pallas_src>
import jax
import jax.numpy as jnp
from jax.experimental import pallas as pl
from jax.experimental.pallas import tpu as pltpu


def _se_kernel(x_ref, w1t_ref, b1_ref, w2t_ref, b2_ref, o_ref):
    """One grid step = Bt full image planes, laid out (Bt, C, HW)."""
    x = x_ref[...]                                           # native dtype

    # Global average pool: 1/HW is pre-folded into w1t, so a plain f32 sum
    # suffices (f32 accumulation even for bf16 inputs).
    pooled = jnp.sum(x.astype(jnp.float32), axis=2)          # (Bt, C)

    # Squeeze 1x1 conv (C -> S) on the MXU.
    h = jnp.dot(pooled, w1t_ref[...],
                preferred_element_type=jnp.float32) + b1_ref[...]   # (Bt, S)
    h = h * jax.nn.sigmoid(h)                                # SiLU

    # Excite 1x1 conv (S -> C) on the MXU (w2 pre-transposed to (S, C)).
    g = jnp.dot(h, w2t_ref[...],
                preferred_element_type=jnp.float32) + b2_ref[...]   # (Bt, C)
    g = jax.nn.sigmoid(g)

    # Gate in the native dtype: avoids a full-plane f32 temp on the store path
    # (v6e/v7x have bf16 VALU; on v5e the compiler promotes as needed).
    gated = x * g[:, :, None].astype(x.dtype)
    o_ref[...] = gated.astype(o_ref.dtype)


def squeeze_excitation(x, w1, b1, w2, b2):
    """SE forward.  x: (N, C, H, W); w1: (S, C); b1: (S,); w2: (C, S); b2: (C,)."""
    N, C, H, W = x.shape
    S = w1.shape[0]
    HW = H * W

    x2 = x.reshape(N, C, HW)

    # ---- parameters (f32; 1/HW folded into the squeeze weight; w2 transposed) --
    f32 = jnp.float32
    w1t = jnp.transpose(w1.astype(f32)) * (1.0 / HW)          # (C, S)
    b1r = b1.astype(f32).reshape(1, S)
    w2t = jnp.transpose(w2.astype(f32))                       # (S, C)
    b2r = b2.astype(f32).reshape(1, C)

    # ---- VMEM budget from the actual chip -------------------------------------
    try:
        vmem_cap = int(pltpu.get_tpu_info().vmem_capacity_bytes)
    except Exception:
        vmem_cap = 64 << 20                                   # conservative (v7x)
    budget = int(vmem_cap * 0.65)                             # ~83 MiB v5e/v6e, ~41 MiB v7x

    plane_in = C * HW * x.dtype.itemsize                      # one in/out plane
    plane_f32 = C * HW * 4                                    # live f32 pooling temp
    weight_bytes = 4 * int(w1t.size + b1r.size + w2t.size + b2r.size)
    slack = 2 << 20

    # Per-image-plane footprint: double-buffered input + output blocks plus the
    # f32 temp that feeds the pooled reduction.
    per_bt = 4 * plane_in + plane_f32

    if per_bt + 2 * weight_bytes + slack > vmem_cap:
        # TODO(synk): spatially tile very large planes (two-pass pool+gate)
        # instead of failing; no EfficientNet stage hits this today.
        raise ValueError(
            f"SE plane ({C}x{HW}, dtype={x.dtype}) too large for VMEM "
            f"({vmem_cap >> 20} MiB) even at Bt=1.")

    avail = budget - 2 * weight_bytes - slack
    bt = int(max(1, min(N, avail // per_bt)))
    grid = (pl.cdiv(N, bt),)                                  # non-divisor Bt is fine:
                                                              # padded rows never write back
    needed = bt * per_bt + 2 * weight_bytes + slack
    vmem_limit = int(min(vmem_cap, max(needed, 16 << 20)))

    out2 = pl.pallas_call(
        _se_kernel,
        out_shape=jax.ShapeDtypeStruct((N, C, HW), x.dtype),
        grid_spec=pltpu.PrefetchScalarGridSpec(
            num_scalar_prefetch=0,
            grid=grid,
            in_specs=[
                pl.BlockSpec((bt, C, HW), lambda n: (n, 0, 0)),   # x: Bt planes
                pl.BlockSpec((C, S), lambda n: (0, 0)),           # W1^T / HW
                pl.BlockSpec((1, S), lambda n: (0, 0)),           # b1
                pl.BlockSpec((S, C), lambda n: (0, 0)),           # W2^T
                pl.BlockSpec((1, C), lambda n: (0, 0)),           # b2
            ],
            out_specs=pl.BlockSpec((bt, C, HW), lambda n: (n, 0, 0)),
        ),
        compiler_params=pltpu.CompilerParams(
            dimension_semantics=("parallel",),
            vmem_limit_bytes=vmem_limit,
        ),
    )(x2, w1t, b1r, w2t, b2r)

    return out2.reshape(N, C, H, W)


def _reference_se(x, w1, b1, w2, b2):
    xf = x.astype(jnp.float32)
    pooled = jnp.mean(xf, axis=(2, 3))                # (N, C)
    h = pooled @ w1.T + b1                            # (N, S)
    h = h * jax.nn.sigmoid(h)                         # SiLU
    g = jax.nn.sigmoid(h @ w2.T + b2)                 # (N, C)
    return (xf * g[:, :, None, None]).astype(x.dtype)


def _make_params(key, C, S):
    k1, kb1, k2, kb2 = jax.random.split(key, 4)
    w1 = 0.2 * jax.random.normal(k1, (S, C), dtype=jnp.float32)
    b1 = 0.1 * jax.random.normal(kb1, (S,), dtype=jnp.float32)
    w2 = 0.2 * jax.random.normal(k2, (C, S), dtype=jnp.float32)
    b2 = 0.1 * jax.random.normal(kb2, (C,), dtype=jnp.float32)
    return w1, b1, w2, b2


def _check(name, x, w1, b1, w2, b2, atol, rtol):
    out = jax.block_until_ready(squeeze_excitation(x, w1, b1, w2, b2))
    ref = _reference_se(x, w1, b1, w2, b2)
    assert out.shape == x.shape and out.dtype == x.dtype
    ok = jnp.allclose(out.astype(jnp.float32), ref.astype(jnp.float32),
                      atol=atol, rtol=rtol)
    assert ok, f"Pallas kernel mismatch vs reference ({name})"


if __name__ == "__main__":
    key = jax.random.PRNGKey(0)
    kx0, kp0, kx1, kp1, kx2, kp2 = jax.random.split(key, 6)

    # 1) Primary small shape: batch=2, channels=4, spatial=16x16, squeeze=2 (f32).
    N, C, H, W, S = 2, 4, 16, 16, 2
    x = jax.random.normal(kx0, (N, C, H, W), dtype=jnp.float32)
    p = _make_params(kp0, C, S)
    _check("f32 / small", x, *p, atol=1e-5, rtol=1e-5)

    # 2) bf16 I/O path (halved HBM traffic; f32 pooled/FC math, bf16 gating).
    _check("bf16 I/O", x.astype(jnp.bfloat16), *p, atol=2e-2, rtol=2e-2)

    # 3) Deep-stage shape: 7x7 plane (lane dim < 128), larger C — no wrapper
    #    transpose; masked stores are hidden under the HBM-bound DMA.
    N2, C2, H2, W2, S2 = 2, 128, 7, 7, 32
    x2 = jax.random.normal(kx1, (N2, C2, H2, W2), dtype=jnp.float32)
    p2 = _make_params(kp1, C2, S2)
    _check("f32 / deep stage", x2, *p2, atol=1e-4, rtol=1e-4)

    # 4) Larger batch: VMEM-budget-limited Bt (all 8 planes in one step here).
    N3, C3, H3, W3, S3 = 8, 8, 16, 16, 4
    x3 = jax.random.normal(kx2, (N3, C3, H3, W3), dtype=jnp.float32)
    p3 = _make_params(kp2, C3, S3)
    _check("f32 / batch-tiled", x3, *p3, atol=1e-5, rtol=1e-5)

    print("KERNEL_OK")
</pallas_src>

<mosaic_0001>
module attributes {stable_mosaic.version = 11 : i64} {
  func.func @_se_kernel(%arg0: i32, %arg1: memref<2x4x256xf32, #tpu.memory_space<vmem>>, %arg2: memref<4x2xf32, #tpu.memory_space<vmem>>, %arg3: memref<1x2xf32, #tpu.memory_space<vmem>>, %arg4: memref<2x4xf32, #tpu.memory_space<vmem>>, %arg5: memref<1x4xf32, #tpu.memory_space<vmem>>, %arg6: memref<2x4x256xf32, #tpu.memory_space<vmem>>) attributes {dimension_semantics = [#tpu.dimension_semantics<parallel>], iteration_bounds = array<i64: 1>, scalar_prefetch = 0 : i64, scratch_operands = 0 : i64, tpu.core_type = #tpu.core_type<tc>, window_params = [{transform_indices = @transform_0, window_bounds = array<i64: 2, 4, 256>}, {pipeline_mode = #tpu.pipeline_mode<synchronous>, transform_indices = @transform_1, window_bounds = array<i64: 4, 2>}, {pipeline_mode = #tpu.pipeline_mode<synchronous>, transform_indices = @transform_2, window_bounds = array<i64: 1, 2>}, {pipeline_mode = #tpu.pipeline_mode<synchronous>, transform_indices = @transform_3, window_bounds = array<i64: 2, 4>}, {pipeline_mode = #tpu.pipeline_mode<synchronous>, transform_indices = @transform_4, window_bounds = array<i64: 1, 4>}, {transform_indices = @transform_5, window_bounds = array<i64: 2, 4, 256>}]} {
    %c0 = arith.constant 0 : index
    %c0_0 = arith.constant 0 : index
    %c0_1 = arith.constant 0 : index
    %0 = vector.load %arg1[%c0, %c0_0, %c0_1] : memref<2x4x256xf32, #tpu.memory_space<vmem>>, vector<2x4x256xf32>
    %cst = arith.constant dense<0.000000e+00> : vector<2x4xf32>
    %1 = vector.multi_reduction <add>, %0, %cst [2] : vector<2x4x256xf32> to vector<2x4xf32>
    %c0_2 = arith.constant 0 : index
    %c0_3 = arith.constant 0 : index
    %2 = vector.load %arg2[%c0_2, %c0_3] : memref<4x2xf32, #tpu.memory_space<vmem>>, vector<4x2xf32>
    %cst_4 = arith.constant dense<0.000000e+00> : vector<2x2xf32>
    %3 = tpu.matmul %1, %2, %cst_4 {dimension_numbers = #tpu.dot_dimension_numbers<[1], [0], [0], [1], [0, 0, 1, 1], [], []>} : vector<2x4xf32>, vector<4x2xf32>, vector<2x2xf32> -> vector<2x2xf32>
    %c0_5 = arith.constant 0 : index
    %c0_6 = arith.constant 0 : index
    %4 = vector.load %arg3[%c0_5, %c0_6] : memref<1x2xf32, #tpu.memory_space<vmem>>, vector<1x2xf32>
    %5 = vector.broadcast %4 : vector<1x2xf32> to vector<2x2xf32>
    %6 = arith.addf %3, %5 : vector<2x2xf32>
    %7 = arith.negf %6 : vector<2x2xf32>
    %8 = math.exp %7 : vector<2x2xf32>
    %cst_7 = arith.constant 1.000000e+00 : f32
    %9 = vector.broadcast %cst_7 : f32 to vector<2x2xf32>
    %10 = arith.addf %9, %8 : vector<2x2xf32>
    %11 = arith.divf %9, %10 : vector<2x2xf32>
    %12 = arith.mulf %6, %11 : vector<2x2xf32>
    %c0_8 = arith.constant 0 : index
    %c0_9 = arith.constant 0 : index
    %13 = vector.load %arg4[%c0_8, %c0_9] : memref<2x4xf32, #tpu.memory_space<vmem>>, vector<2x4xf32>
    %cst_10 = arith.constant dense<0.000000e+00> : vector<2x4xf32>
    %14 = tpu.matmul %12, %13, %cst_10 {dimension_numbers = #tpu.dot_dimension_numbers<[1], [0], [0], [1], [0, 0, 1, 1], [], []>} : vector<2x2xf32>, vector<2x4xf32>, vector<2x4xf32> -> vector<2x4xf32>
    %c0_11 = arith.constant 0 : index
    %c0_12 = arith.constant 0 : index
    %15 = vector.load %arg5[%c0_11, %c0_12] : memref<1x4xf32, #tpu.memory_space<vmem>>, vector<1x4xf32>
    %16 = vector.broadcast %15 : vector<1x4xf32> to vector<2x4xf32>
    %17 = arith.addf %14, %16 : vector<2x4xf32>
    %18 = arith.negf %17 : vector<2x4xf32>
    %19 = math.exp %18 : vector<2x4xf32>
    %cst_13 = arith.constant 1.000000e+00 : f32
    %20 = vector.broadcast %cst_13 : f32 to vector<2x4xf32>
    %21 = arith.addf %20, %19 : vector<2x4xf32>
    %22 = arith.divf %20, %21 : vector<2x4xf32>
    %23 = vector.shape_cast %22 : vector<2x4xf32> to vector<2x4x1xf32>
    %24 = vector.broadcast %23 : vector<2x4x1xf32> to vector<2x4x256xf32>
    %25 = arith.mulf %0, %24 : vector<2x4x256xf32>
    %c0_14 = arith.constant 0 : index
    %c0_15 = arith.constant 0 : index
    %c0_16 = arith.constant 0 : index
    %26 = vector.load %arg6[%c0_14, %c0_15, %c0_16] : memref<2x4x256xf32, #tpu.memory_space<vmem>>, vector<2x4x256xf32>
    tpu.vector_store %arg6[%c0_14, %c0_15, %c0_16], %25 {strides = array<i32>} : memref<2x4x256xf32, #tpu.memory_space<vmem>>, vector<2x4x256xf32>,
    return
  }
  func.func @transform_0(%arg0: i32) -> (i32, i32, i32) {
    %c0_i32 = arith.constant 0 : i32
    %c0_i32_0 = arith.constant 0 : i32
    %c0_i32_1 = arith.constant 0 : i32
    return %arg0, %c0_i32, %c0_i32_0 : i32, i32, i32
  }
  func.func @transform_1(%arg0: i32) -> (i32, i32) {
    %c0_i32 = arith.constant 0 : i32
    %c0_i32_0 = arith.constant 0 : i32
    %c0_i32_1 = arith.constant 0 : i32
    return %c0_i32, %c0_i32_0 : i32, i32
  }
  func.func @transform_2(%arg0: i32) -> (i32, i32) {
    %c0_i32 = arith.constant 0 : i32
    %c0_i32_0 = arith.constant 0 : i32
    %c0_i32_1 = arith.constant 0 : i32
    return %c0_i32, %c0_i32_0 : i32, i32
  }
  func.func @transform_3(%arg0: i32) -> (i32, i32) {
    %c0_i32 = arith.constant 0 : i32
    %c0_i32_0 = arith.constant 0 : i32
    %c0_i32_1 = arith.constant 0 : i32
    return %c0_i32, %c0_i32_0 : i32, i32
  }
  func.func @transform_4(%arg0: i32) -> (i32, i32) {
    %c0_i32 = arith.constant 0 : i32
    %c0_i32_0 = arith.constant 0 : i32
    %c0_i32_1 = arith.constant 0 : i32
    return %c0_i32, %c0_i32_0 : i32, i32
  }
  func.func @transform_5(%arg0: i32) -> (i32, i32, i32) {
    %c0_i32 = arith.constant 0 : i32
    %c0_i32_0 = arith.constant 0 : i32
    %c0_i32_1 = arith.constant 0 : i32
    return %arg0, %c0_i32, %c0_i32_0 : i32, i32, i32
  }
}

</mosaic_0001>

<llo_original>
// kernel: tpu_custom_call.1
$region0: #{tpu_custom_call.1}
  #allocation0 [shape = 'u32[]', space=smem, size = 0x4, offset = 0x4, fixed_abs, tag = 'smem constant byte address 0x4 - core index']
  #allocation1 [shape = 'u32[144,128]{1,0:T(1,128)}', space=vmem, size = 0x12000, scoped, tag = 'internal scratch']
  %s0 = inlined_call_operand.hbm [shape: f32[2,4,256], index: 0, kind: input, shape index: {}]
  %s1 = inlined_call_operand.vmem [shape: f32[4,2], index: 1, kind: input, shape index: {}]
  %s2 = inlined_call_operand.vmem [shape: f32[1,2], index: 2, kind: input, shape index: {}]
  %s3 = inlined_call_operand.vmem [shape: f32[2,4], index: 3, kind: input, shape index: {}]
  %s4 = inlined_call_operand.vmem [shape: f32[1,4], index: 4, kind: input, shape index: {}]
  %s5 = inlined_call_operand.hbm [shape: f32[2,4,256], index: 5, kind: output, shape index: {}]
  %s6 = sld [smem:[#allocation0]]
  $region34: #{tpu_custom_call.1} parent=0
    _
  %s8 = ssub.s32 1, %s6
  %s9 = scalar_select 0, %s8, %s6
  $region1: #{tpu_custom_call.1} parent=0
    #allocation2 [shape = 'u8[8192]{0}', space=vmem, size = 0x2000, scoped, tag = 'input window, operand 0, single buffered']
    #allocation3 [shape = 's32[1]{0}', space=sflag, size = 0x4, scoped, tag = 'scoped memory for tpu_custom_call.1']
    #allocation4 [shape = 's32[1]{0}', space=sflag, size = 0x4, scoped, tag = 'scoped memory for tpu_custom_call.1']
    #allocation5 [shape = 'u8[8192]{0}', space=vmem, size = 0x2000, scoped, tag = 'output window, operand 0, single buffered']
    %10 = vsyncpa [#allocation3], 0
    %11 = vsyncpa [#allocation4], 0
    // Predicated region
    $region2: #{tpu_custom_call.1} parent=1 // pred_check
      _
    $region3: #{tpu_custom_call.1} parent=1 // pred_check_branch
      %13 = sbr.rel (0) target = $region5
    $region4: #{tpu_custom_call.1} parent=1 // pred_region
      %s15 = ssub.s32 256, 256
      %16 = vsyncadd [#allocation3], %s15
      %s17 = sshll.u32 [#allocation2], 4
      %s18 = int_to_ptr.vmem [resolvable:$true] %s17
      %23 = dma.hbm_to_vmem [thread:$0]  %s0, 256, %s18, [#allocation3], 128, 128, 8
    $region5: #{tpu_custom_call.1} parent=1 // pred_fallthru
      _
    // Predicated region
    $region6: #{tpu_custom_call.1} parent=1 // pred_check
      _
    $region7: #{tpu_custom_call.1} parent=1 // pred_check_branch
      %25 = sbr.rel (0) target = $region9
    $region8: #{tpu_custom_call.1} parent=1 // pred_region
      _
    $region9: #{tpu_custom_call.1} parent=1 // pred_fallthru
      _
    // Predicated region
    $region10: #{tpu_custom_call.1} parent=1 // pred_check
      _
    $region11: #{tpu_custom_call.1} parent=1 // pred_check_branch
      %27 = sbr.rel (0) target = $region13
    $region12: #{tpu_custom_call.1} parent=1 // pred_region
      _
    $region13: #{tpu_custom_call.1} parent=1 // pred_fallthru
      _
    // Predicated region
    $region14: #{tpu_custom_call.1} parent=1 // pred_check
      _
    $region15: #{tpu_custom_call.1} parent=1 // pred_check_branch
      %29 = sbr.rel (0) target = $region17
    $region16: #{tpu_custom_call.1} parent=1 // pred_region
      _
    $region17: #{tpu_custom_call.1} parent=1 // pred_fallthru
      _
    // Predicated region
    $region18: #{tpu_custom_call.1} parent=1 // pred_check
      _
    $region19: #{tpu_custom_call.1} parent=1 // pred_check_branch
      %31 = sbr.rel (0) target = $region21
    $region20: #{tpu_custom_call.1} parent=1 // pred_region
      _
    $region21: #{tpu_custom_call.1} parent=1 // pred_fallthru
      _
    // Predicated region
    $region22: #{tpu_custom_call.1} parent=1 // pred_check
      _
    $region23: #{tpu_custom_call.1} parent=1 // pred_check_branch
      %33 = sbr.rel (0) target = $region25
    $region24: #{tpu_custom_call.1} parent=1 // pred_region
      %34 = dma.done [#allocation3], 256
    $region25: #{tpu_custom_call.1} parent=1 // pred_fallthru
      _
    %v35 = vld [vmem:[#allocation2] sm:$0xff]
    %v36 = vld [vmem:[#allocation2 + $0x8] sm:$0xff]
    %v39 = vcombine.high %v35, %v35
    %v40 = vcombine.high %v36, %v36
    %vm43 = vcmask 1043456
    %v44 = vsel %vm43, %v35, 0.0
    %v45 = vsel %vm43, %v39, 0.0
    %v46 = vadd.f32 %v44, %v45
    %47 = vadd.xlane.f32.xlu0 %v46
    %v48 = vpop.xlane.xlu0 %47
    %v49 = vsel %vm43, %v36, 0.0
    %v50 = vsel %vm43, %v40, 0.0
    %v51 = vadd.f32 %v49, %v50
    %52 = vadd.xlane.f32.xlu0 %v51
    %v53 = vpop.xlane.xlu0 %52
    %v54 = vld [vmem:[%s1] sm:$0xf]
    %v55 = vld [vmem:[%s2] sm:$0x1]
    %v57 = vlaneseq
    %v58 = vshrl.u32 %v57, 7
    %v59 = vsub.s32 0, %v58
    %v60 = vrot.slane %v55, %v59
    %v64 = vlaneseq
    %v65 = vand.u32 %v64, 127
    %v66 = vlaneseq
    %v67 = vshrl.u32 %v66, 7
    %v68 = vsub.s32 %v65, %v67
    %v69 = vrot.slane %v48, %v68
    %v70 = vlaneseq
    %v71 = vshrl.u32 %v70, 7
    %v72 = vsub.s32 %v65, %v71
    %v73 = vrot.slane %v53, %v72
    %vm74 = vcmask 1041409
    %v75 = vsel %vm74, %v73, %v69
    %vm76 = vcmask 31744
    %v77 = vsel %vm76, %v75, 0
    %v80 = vsel %vm43, %v54, 0
    %82 = vmatprep.subr.mxu0 0.0
    %83 = vmatpush1.msra.mxu0 %v80
    %84 = vmatprep.subr.mxu0 0.0
    %85 = vmatpush1.msra.mxu0 0.0
    %86 = vmatprep.subr.mxu0 0.0
    %87 = vmatpush1.msra.mxu0 0.0
    %88 = vmatprep.subr.mxu0 0.0
    %89 = vmatpush1.msra.mxu0 0.0
    %90 = vmatprep.subr.mxu0 0.0
    %91 = vmatpush1.msra.mxu0 0.0
    %92 = vmatprep.subr.mxu0 0.0
    %93 = vmatpush1.msra.mxu0 0.0
    %94 = vmatprep.subr.mxu0 0.0
    %95 = vmatpush1.msra.mxu0 0.0
    %96 = vmatprep.subr.mxu0 0.0
    %97 = vmatpush1.msra.mxu0 0.0
    %98 = vmatprep.subr.mxu0 0.0
    %99 = vmatpush1.msra.mxu0 0.0
    %100 = vmatprep.subr.mxu0 0.0
    %101 = vmatpush1.msra.mxu0 0.0
    %102 = vmatprep.subr.mxu0 0.0
    %103 = vmatpush1.msra.mxu0 0.0
    %104 = vmatprep.subr.mxu0 0.0
    %105 = vmatpush1.msra.mxu0 0.0
    %106 = vmatprep.subr.mxu0 0.0
    %107 = vmatpush1.msra.mxu0 0.0
    %108 = vmatprep.subr.mxu0 0.0
    %109 = vmatpush1.msra.mxu0 0.0
    %110 = vmatprep.subr.mxu0 0.0
    %111 = vmatpush1.msra.mxu0 0.0
    %112 = vmatprep.subr.mxu0 0.0
    %113 = vmatpush1.msra.mxu0 0.0
    %114 = vmatprep.subr.mxu0 0.0
    %115 = vmatpush1.msra.mxu0 0.0
    %116 = vmatprep.subr.mxu0 0.0
    %117 = vmatpush1.msra.mxu0 0.0
    %118 = vmatprep.subr.mxu0 0.0
    %119 = vmatpush1.msra.mxu0 0.0
    %120 = vmatprep.subr.mxu0 0.0
    %121 = vmatpush1.msra.mxu0 0.0
    %122 = vmatprep.subr.mxu0 0.0
    %123 = vmatpush1.msra.mxu0 0.0
    %124 = vmatprep.subr.mxu0 0.0
    %125 = vmatpush1.msra.mxu0 0.0
    %126 = vmatprep.subr.mxu0 0.0
    %127 = vmatpush1.msra.mxu0 0.0
    %128 = vmatprep.subr.mxu0 0.0
    %129 = vmatpush1.msra.mxu0 0.0
    %130 = vmatprep.subr.mxu0 0.0
    %131 = vmatpush1.msra.mxu0 0.0
    %132 = vmatprep.subr.mxu0 0.0
    %133 = vmatpush1.msra.mxu0 0.0
    %134 = vmatprep.subr.mxu0 0.0
    %135 = vmatpush1.msra.mxu0 0.0
    %136 = vmatprep.subr.mxu0 0.0
    %137 = vmatpush1.msra.mxu0 0.0
    %138 = vmatprep.subr.mxu0 0.0
    %139 = vmatpush1.msra.mxu0 0.0
    %140 = vmatprep.subr.mxu0 0.0
    %141 = vmatpush1.msra.mxu0 0.0
    %142 = vmatprep.subr.mxu0 0.0
    %143 = vmatpush1.msra.mxu0 0.0
    %144 = vmatprep.subr.mxu0 0.0
    %145 = vmatpush1.msra.mxu0 0.0
    %146 = vmatprep.mubr.f32.mxu0 0.0
    %147 = vmatmul.mubr.f32.gmra.mrb[0].mxu0 %v77
    %v148 = vpop.f32.mrb[0].mxu0
    %v149 = vadd.f32 %v60, %v148
    %v150 = vpop.f32.mrb[0].mxu0
    %151 = vdwg.mxu0
    %v152 = vxor.u32 %v149, 2147483648
    %v153 = vmul.f32 %v152, 1.442695
    %v154 = vpow.pop %v153
    %v155 = vadd.f32 %v154, 1.0
    %v156 = vrcp.pop %v155
    %v157 = vmul.f32 1.0, %v156
    %v158 = vmul.f32 %v149, %v157
    %v159 = vld [vmem:[%s3] sm:$0x3]
    %v160 = vld [vmem:[%s4] sm:$0x1]
    %v162 = vlaneseq
    %v163 = vshrl.u32 %v162, 7
    %v164 = vsub.s32 0, %v163
    %v165 = vrot.slane %v160, %v164
    %vm167 = vcmask 15360
    %v169 = vsel %vm167, %v158, 0
    %vm171 = vcmask 1041408
    %v173 = vsel %vm171, %v159, 0
    %175 = vmatprep.subr.mxu0 0.0
    %176 = vmatpush1.msra.mxu0 %v173
    %177 = vmatprep.subr.mxu0 0.0
    %178 = vmatpush1.msra.mxu0 0.0
    %179 = vmatprep.subr.mxu0 0.0
    %180 = vmatpush1.msra.mxu0 0.0
    %181 = vmatprep.subr.mxu0 0.0
    %182 = vmatpush1.msra.mxu0 0.0
    %183 = vmatprep.subr.mxu0 0.0
    %184 = vmatpush1.msra.mxu0 0.0
    %185 = vmatprep.subr.mxu0 0.0
    %186 = vmatpush1.msra.mxu0 0.0
    %187 = vmatprep.subr.mxu0 0.0
    %188 = vmatpush1.msra.mxu0 0.0
    %189 = vmatprep.subr.mxu0 0.0
    %190 = vmatpush1.msra.mxu0 0.0
    %191 = vmatprep.subr.mxu0 0.0
    %192 = vmatpush1.msra.mxu0 0.0
    %193 = vmatprep.subr.mxu0 0.0
    %194 = vmatpush1.msra.mxu0 0.0
    %195 = vmatprep.subr.mxu0 0.0
    %196 = vmatpush1.msra.mxu0 0.0
    %197 = vmatprep.subr.mxu0 0.0
    %198 = vmatpush1.msra.mxu0 0.0
    %199 = vmatprep.subr.mxu0 0.0
    %200 = vmatpush1.msra.mxu0 0.0
    %201 = vmatprep.subr.mxu0 0.0
    %202 = vmatpush1.msra.mxu0 0.0
    %203 = vmatprep.subr.mxu0 0.0
    %204 = vmatpush1.msra.mxu0 0.0
    %205 = vmatprep.subr.mxu0 0.0
    %206 = vmatpush1.msra.mxu0 0.0
    %207 = vmatprep.subr.mxu0 0.0
    %208 = vmatpush1.msra.mxu0 0.0
    %209 = vmatprep.subr.mxu0 0.0
    %210 = vmatpush1.msra.mxu0 0.0
    %211 = vmatprep.subr.mxu0 0.0
    %212 = vmatpush1.msra.mxu0 0.0
    %213 = vmatprep.subr.mxu0 0.0
    %214 = vmatpush1.msra.mxu0 0.0
    %215 = vmatprep.subr.mxu0 0.0
    %216 = vmatpush1.msra.mxu0 0.0
    %217 = vmatprep.subr.mxu0 0.0
    %218 = vmatpush1.msra.mxu0 0.0
    %219 = vmatprep.subr.mxu0 0.0
    %220 = vmatpush1.msra.mxu0 0.0
    %221 = vmatprep.subr.mxu0 0.0
    %222 = vmatpush1.msra.mxu0 0.0
    %223 = vmatprep.subr.mxu0 0.0
    %224 = vmatpush1.msra.mxu0 0.0
    %225 = vmatprep.subr.mxu0 0.0
    %226 = vmatpush1.msra.mxu0 0.0
    %227 = vmatprep.subr.mxu0 0.0
    %228 = vmatpush1.msra.mxu0 0.0
    %229 = vmatprep.subr.mxu0 0.0
    %230 = vmatpush1.msra.mxu0 0.0
    %231 = vmatprep.subr.mxu0 0.0
    %232 = vmatpush1.msra.mxu0 0.0
    %233 = vmatprep.subr.mxu0 0.0
    %234 = vmatpush1.msra.mxu0 0.0
    %235 = vmatprep.subr.mxu0 0.0
    %236 = vmatpush1.msra.mxu0 0.0
    %237 = vmatprep.subr.mxu0 0.0
    %238 = vmatpush1.msra.mxu0 0.0
    %239 = vmatprep.mubr.f32.mxu0 0.0
    %240 = vmatmul.mubr.f32.gmra.mrb[0].mxu0 %v169
    %v241 = vpop.f32.mrb[0].mxu0
    %v242 = vadd.f32 %v165, %v241
    %v243 = vpop.f32.mrb[0].mxu0
    %244 = vdwg.mxu0
    %v245 = vxor.u32 %v242, 2147483648
    %v246 = vmul.f32 %v245, 1.442695
    %v247 = vpow.pop %v246
    %v248 = vadd.f32 %v247, 1.0
    %v249 = vrcp.pop %v248
    %v250 = vmul.f32 1.0, %v249
    %v251 = vlaneseq
    %v252 = vshrl.u32 %v251, 7
    %v253 = vsub.s32 0, %v252
    %v254 = vrot.slane %v250, %v253
    %256 = vbcast.lane.b32.xlu0 %v254, 256
    %v257 = vpop.permute.xlu0 %256
    %v258 = vlaneseq
    %v259 = vshrl.u32 %v258, 7
    %v260 = vsub.s32 1, %v259
    %v261 = vrot.slane %v250, %v260
    %263 = vbcast.lane.b32.xlu0 %v261, 256
    %v264 = vpop.permute.xlu0 %263
    %v268 = vunpack.c.l.s4 839922192
    %v269 = vunpack.c.0.s8 %v268
    %v270 = vlaneseq
    %v271 = vshrl.u32 %v270, 7
    %v272 = vsub.s32 %v269, %v271
    %v273 = vrot.slane %v257, %v272
    %v275 = vunpack.c.l.s4 839922192
    %v276 = vunpack.c.0.s8 %v275
    %v277 = vlaneseq
    %v278 = vshrl.u32 %v277, 7
    %v279 = vsub.s32 %v276, %v278
    %v280 = vrot.slane %v264, %v279
    %v283 = vmul.f32 %v35, %v273
    %v284 = vmul.f32 %v36, %v280
    %285 = vst [vmem:[#allocation5] sm:$0xff] %v283
    %286 = vst [vmem:[#allocation5 + $0x8] sm:$0xff] %v284
    // Predicated region
    $region26: #{tpu_custom_call.1} parent=1 // pred_check
      _
    $region27: #{tpu_custom_call.1} parent=1 // pred_check_branch
      %288 = sbr.rel (0) target = $region29
    $region28: #{tpu_custom_call.1} parent=1 // pred_region
      %s290 = ssub.s32 256, 256
      %291 = vsyncadd [#allocation4], %s290
      %s292 = sshll.u32 [#allocation5], 4
      %s293 = int_to_ptr.vmem [resolvable:$true] %s292
      %298 = dma.vmem_to_hbm [thread:$0]  %s293, 256, %s5, [#allocation4], 128, 128, 8
    $region29: #{tpu_custom_call.1} parent=1 // pred_fallthru
      _
    // Predicated region
    $region30: #{tpu_custom_call.1} parent=1 // pred_check
      _
    $region31: #{tpu_custom_call.1} parent=1 // pred_check_branch
      %300 = sbr.rel (0) target = $region33
    $region32: #{tpu_custom_call.1} parent=1 // pred_region
      %301 = dma.done [#allocation4], 256
    $region33: #{tpu_custom_call.1} parent=1 // pred_fallthru
      _
    %302 = vsyncpa [#allocation3], 1
    %303 = vsyncpa [#allocation4], 1

</llo_original>
